<compile_context>
chip_gen: v6e
topology: v6e:2x2x1
jax: 0.10.0
libtpu: 0.0.40
codegen_flags: <defaults>
</compile_context>

<pallas_src>
import functools

import jax
import jax.numpy as jnp
from jax.experimental import pallas as pl
from jax.experimental.pallas import tpu as pltpu

IN_FEATURES = 768
OUT_FEATURES = 1024

_SINGLE_TC_CHIP_TAGS = ("v5e", "v5 lite", "v5lite", "v6e", "v6 lite", "v6lite")


def _default_tn():
    """N-tile default: one grid step on single-TensorCore chips (v5e/v6e); two steps on
    megacore chips (v7x/v5p/v4) so each TensorCore DMAs only half of the weight."""
    try:
        kind = jax.devices()[0].device_kind.lower()
    except Exception:
        return 1024  # single N step is correct and near-optimal everywhere
    if any(tag in kind for tag in _SINGLE_TC_CHIP_TAGS):
        return 1024
    return 512


def prepare_gating_params(w, b, *, weight_dtype=jnp.float32):
    """One-time (model-load) parameter prep, amortized across calls.

    * Transposes the torch nn.Linear weight (1024, 768) -> (768, 1024) so the kernel runs a
      plain MXU (M,K)x(K,N) contraction (no per-call transpose, no in-kernel XLU transpose).
    * Optionally casts the weight to bfloat16: the kernel is HBM-bound on the weight fetch,
      so halving weight bytes is ~1.7-2x wall clock on all chip generations.  The kernel
      still accumulates in f32.
    * Reshapes bias to (1, N) once for TPU 2-D tiling.
    """
    wT = jnp.asarray(w, dtype=weight_dtype).T            # (768, 1024)
    b2 = jnp.asarray(b, dtype=jnp.float32).reshape(1, -1)  # (1, 1024)
    return wT, b2


def _linear_kernel(x_ref, w_ref, b_ref, o_ref):
    # x_ref : (TM, K)  activations tile
    # w_ref : (K, TN)  pre-transposed weight tile (f32 or bf16)
    # b_ref : (1, TN)  bias tile
    # o_ref : (TM, TN) output tile
    acc = jnp.dot(x_ref[...], w_ref[...], preferred_element_type=jnp.float32)
    o_ref[...] = (acc + b_ref[...].astype(jnp.float32)).astype(o_ref.dtype)


def _pick_tm(mp):
    # mp is already a multiple of 8; pick the largest tile <= 512 that divides it so no
    # extra pad rows (wasted x DMA, MXU passes, output writeback) are ever introduced.
    if mp <= 512:
        return mp
    for t in (512, 256, 128, 64, 32, 16, 8):
        if mp % t == 0:
            return t
    return 8  # unreachable: mp % 8 == 0


@functools.partial(jax.jit, static_argnames=("tn",))
def _gating_linear(x, wT, b2, *, tn):
    M, K = x.shape
    K2, N = wT.shape
    assert K == K2 == IN_FEATURES and N == OUT_FEATURES
    assert N % tn == 0 and tn % 128 == 0

    # Pad batch only to the f32 sublane multiple (8); tm divides the padded batch exactly.
    pad = (-M) % 8
    if pad:
        x = jnp.pad(x, ((0, pad), (0, 0)))
    mp = M + pad
    tm = _pick_tm(mp)

    n_steps = N // tn
    isz = lambda a: jnp.dtype(a.dtype).itemsize
    cost = pl.CostEstimate(
        flops=2 * mp * K * N,
        bytes_accessed=(mp * K * isz(x)) * n_steps     # x re-read once per N step (<=2)
        + K * N * isz(wT)                              # weight streamed exactly once (N outer)
        + N * isz(b2)
        + mp * N * isz(x),                             # output writeback
        transcendentals=0,
    )

    # N is the OUTER grid axis: the weight block index only changes with the outer step, so
    # the full weight is fetched from HBM once total (and the v7x megacore split lands on N).
    grid = (n_steps, mp // tm)
    out = pl.pallas_call(
        _linear_kernel,
        out_shape=jax.ShapeDtypeStruct((mp, N), x.dtype),
        grid_spec=pltpu.PrefetchScalarGridSpec(
            num_scalar_prefetch=0,
            grid=grid,
            in_specs=[
                pl.BlockSpec((tm, K), lambda j, i: (i, 0)),   # x: M tile, full K
                pl.BlockSpec((K, tn), lambda j, i: (0, j)),   # W^T: full K, N tile
                pl.BlockSpec((1, tn), lambda j, i: (0, j)),   # bias: N tile
            ],
            out_specs=pl.BlockSpec((tm, tn), lambda j, i: (i, j)),
        ),
        compiler_params=pltpu.CompilerParams(
            dimension_semantics=("parallel", "parallel"),
            # Worst case (tm=512, tn=1024, f32, double-buffered) ~13 MiB; lift v5e's 16 MiB
            # default scoped-VMEM limit out of the danger zone.  Fine on v6e/v7x too.
            vmem_limit_bytes=32 * 1024 * 1024,
        ),
        cost_estimate=cost,
    )(x, wT, b2)

    return out[:M] if mp != M else out


def gating_linear(x, wT, b2, *, tn=None):
    """y = x @ wT + b  (torch.nn.Linear(768, 1024) forward semantics).

    x : (batch, 768) float32
    wT: (768, 1024)  float32 or bfloat16 (from prepare_gating_params)
    b2: (1, 1024)    float32             (from prepare_gating_params)
    returns (batch, 1024) float32
    """
    if tn is None:
        tn = _default_tn()
    return _gating_linear(x, wT, b2, tn=tn)


if __name__ == "__main__":
    key = jax.random.PRNGKey(0)
    kx, kw, kb = jax.random.split(key, 3)

    batch = 8
    # Deterministic synthetic parameters (shapes from nn.Linear(768, 1024)); match PyTorch's
    # default init range U(-1/sqrt(fan_in), 1/sqrt(fan_in)).
    bound = 1.0 / jnp.sqrt(jnp.float32(IN_FEATURES))
    x = jax.random.normal(kx, (batch, IN_FEATURES), dtype=jnp.float32)
    w = jax.random.uniform(kw, (OUT_FEATURES, IN_FEATURES), dtype=jnp.float32,
                           minval=-bound, maxval=bound)
    b = jax.random.uniform(kb, (OUT_FEATURES,), dtype=jnp.float32,
                           minval=-bound, maxval=bound)

    y_ref = x @ w.T + b

    # Exact torch.nn.Linear f32 semantics.
    wT_f32, b2 = prepare_gating_params(w, b, weight_dtype=jnp.float32)
    y = jax.block_until_ready(gating_linear(x, wT_f32, b2))
    assert y.shape == (batch, OUT_FEATURES)
    assert jnp.allclose(y, y_ref, atol=1e-4, rtol=1e-4)

    # Perf-recommended path: bf16 weights (halve the dominant HBM stream), f32 accumulation.
    wT_bf16, _ = prepare_gating_params(w, b, weight_dtype=jnp.bfloat16)
    y_bf = jax.block_until_ready(gating_linear(x, wT_bf16, b2))
    assert jnp.allclose(y_bf, y_ref, atol=5e-2, rtol=5e-2)

    # TODO(synk): forward(message)/backward/resync are abstract string + metagraph plumbing —
    # the only concrete tensor op in BaseGatingModel is the Linear(768, 1024) implemented above.
    print("KERNEL_OK")
</pallas_src>

<mosaic_0001>
module attributes {stable_mosaic.version = 11 : i64} {
  func.func @_linear_kernel(%arg0: i32, %arg1: i32, %arg2: memref<8x768xf32, #tpu.memory_space<vmem>>, %arg3: memref<768x512xf32, #tpu.memory_space<vmem>>, %arg4: memref<1x512xf32, #tpu.memory_space<vmem>>, %arg5: memref<8x512xf32, #tpu.memory_space<vmem>>) attributes {dimension_semantics = [#tpu.dimension_semantics<parallel>, #tpu.dimension_semantics<parallel>], iteration_bounds = array<i64: 2, 1>, scalar_prefetch = 0 : i64, scratch_operands = 0 : i64, tpu.core_type = #tpu.core_type<tc>, window_params = [{transform_indices = @transform_0, window_bounds = array<i64: 8, 768>}, {transform_indices = @transform_1, window_bounds = array<i64: 768, 512>}, {transform_indices = @transform_2, window_bounds = array<i64: 1, 512>}, {transform_indices = @transform_3, window_bounds = array<i64: 8, 512>}]} {
    %c0 = arith.constant 0 : index
    %c0_0 = arith.constant 0 : index
    %0 = vector.load %arg2[%c0, %c0_0] : memref<8x768xf32, #tpu.memory_space<vmem>>, vector<8x768xf32>
    %c0_1 = arith.constant 0 : index
    %c0_2 = arith.constant 0 : index
    %1 = vector.load %arg3[%c0_1, %c0_2] : memref<768x512xf32, #tpu.memory_space<vmem>>, vector<768x512xf32>
    %cst = arith.constant dense<0.000000e+00> : vector<8x512xf32>
    %2 = tpu.matmul %0, %1, %cst {dimension_numbers = #tpu.dot_dimension_numbers<[1], [0], [0], [1], [0, 0, 1, 1], [], []>} : vector<8x768xf32>, vector<768x512xf32>, vector<8x512xf32> -> vector<8x512xf32>
    %c0_3 = arith.constant 0 : index
    %c0_4 = arith.constant 0 : index
    %3 = vector.load %arg4[%c0_3, %c0_4] : memref<1x512xf32, #tpu.memory_space<vmem>>, vector<1x512xf32>
    %4 = vector.broadcast %3 : vector<1x512xf32> to vector<8x512xf32>
    %5 = arith.addf %2, %4 : vector<8x512xf32>
    %c0_5 = arith.constant 0 : index
    %c0_6 = arith.constant 0 : index
    %6 = vector.load %arg5[%c0_5, %c0_6] : memref<8x512xf32, #tpu.memory_space<vmem>>, vector<8x512xf32>
    tpu.vector_store %arg5[%c0_5, %c0_6], %5 {strides = array<i32>} : memref<8x512xf32, #tpu.memory_space<vmem>>, vector<8x512xf32>,
    return
  }
  func.func @transform_0(%arg0: i32, %arg1: i32) -> (i32, i32) {
    %c0_i32 = arith.constant 0 : i32
    %c0_i32_0 = arith.constant 0 : i32
    return %arg1, %c0_i32 : i32, i32
  }
  func.func @transform_1(%arg0: i32, %arg1: i32) -> (i32, i32) {
    %c0_i32 = arith.constant 0 : i32
    %c0_i32_0 = arith.constant 0 : i32
    return %c0_i32, %arg0 : i32, i32
  }
  func.func @transform_2(%arg0: i32, %arg1: i32) -> (i32, i32) {
    %c0_i32 = arith.constant 0 : i32
    %c0_i32_0 = arith.constant 0 : i32
    return %c0_i32, %arg0 : i32, i32
  }
  func.func @transform_3(%arg0: i32, %arg1: i32) -> (i32, i32) {
    %c0_i32 = arith.constant 0 : i32
    return %arg1, %arg0 : i32, i32
  }
}

</mosaic_0001>

<llo_original>
// kernel: _gating_linear.1
$region0: #{_gating_linear.1}
  #allocation0 [shape = 'u32[]', space=smem, size = 0x4, offset = 0x4, fixed_abs, tag = 'smem constant byte address 0x4 - core index']
  #allocation1 [shape = 'u32[144,128]{1,0:T(1,128)}', space=vmem, size = 0x12000, scoped, tag = 'internal scratch']
  %s0 = inlined_call_operand.hbm [shape: f32[8,768], index: 0, kind: input, shape index: {}]
  %s1 = inlined_call_operand.hbm [shape: f32[768,1024], index: 1, kind: input, shape index: {}]
  %s2 = inlined_call_operand.hbm [shape: f32[1,1024], index: 2, kind: input, shape index: {}]
  %s3 = inlined_call_operand.hbm [shape: f32[8,1024], index: 3, kind: output, shape index: {}]
  %s4 = sld [smem:[#allocation0]]
  $region57: #{_gating_linear.1} parent=0
    _
  %s6 = ssub.s32 1, %s4
  %s7 = scalar_select 0, %s6, %s4
  $region1: #{_gating_linear.1} parent=0
    #allocation2 [shape = 'u8[24576]{0}', space=vmem, size = 0x6000, scoped, tag = 'input window, operand 0, single buffered']
    #allocation3 [shape = 's32[2]{0}', space=sflag, size = 0x8, scoped, tag = 'scoped memory for _gating_linear.1']
    #allocation4 [shape = 's32[2]{0}', space=sflag, size = 0x8, scoped, tag = 'scoped memory for _gating_linear.1']
    #allocation5 [shape = 'u8[3145728]{0}', space=vmem, size = 0x300000, scoped, tag = 'input window, operand 1']
    #allocation6 [shape = 's32[2]{0}', space=sflag, size = 0x8, scoped, tag = 'scoped memory for _gating_linear.1']
    #allocation7 [shape = 'u8[4096]{0}', space=vmem, size = 0x1000, scoped, tag = 'input window, operand 2']
    #allocation8 [shape = 'u8[32768]{0}', space=vmem, size = 0x8000, scoped, tag = 'output window, operand 0']
    %8 = vsyncpa [#allocation3], 0
    %9 = vsyncpa [#allocation6], 0
    %s10 = scalar_lea.sflag [#allocation6], 1
    %11 = vsyncpa %s10, 0
    %12 = vsyncpa [#allocation4], 0
    %s13 = scalar_lea.sflag [#allocation4], 1
    %14 = vsyncpa %s13, 0
    loop: start=0, step=1, limit=4
    $region2: #{_gating_linear.1} parent=1 // loop_pre_header
      _
    $region3: #{_gating_linear.1} parent=1 // loop_header
      %s16 = sphi 0, %s20
      %p17 = scmp.ge.s32.totalorder %s16, 4
      %s23 = sphi 0, %s35
      %s24 = sphi 0, %s31
      %s25 = sphi 0, %s23
      %s26 = sphi 0, %s24
      %s27 = sphi 0, %s25
      %s28 = sphi 0, %s26
      %s38 = sphi 0, %s40
      %s41 = sphi 0, %s38
      %s42 = sphi 0, %s41
      %s58 = sphi 0, %s42
      %s64 = sphi 0, %s66
      %s67 = sphi 0, %s64
      %s68 = sphi 0, %s67
      %s84 = sphi 0, %s68
      %s90 = sphi 0, %s92
      %s93 = sphi 0, %s90
      %s94 = sphi 0, %s93
      %s110 = sphi 0, %s94
      %s118 = sphi 0, %s120
      %s121 = sphi 0, %s118
      %s122 = sphi 0, %s121
      %s138 = sphi 0, %s122
    $region4: #{_gating_linear.1} parent=1 // loop_header_branch
      %19 = sbr.rel (%p17) target = $region8
    $region5: #{_gating_linear.1} parent=1 // loop_body
      %s21 = ssub.s32 %s16, 1
      %s22 = ssub.s32 %s16, 2
      %s29 = sadd.s32 1, %s24
      %p30 = scmp.ge.s32.totalorder %s29, 1
      %s31 = scalar_select %p30, 0, %s29
      %s32 = sadd.s32 1, %s23
      %s33 = scalar_select %p30, %s32, %s23
      %p34 = scmp.ge.s32.totalorder %s33, 2
      %s35 = scalar_select %p34, 0, %s33
      %s36 = ssub.s32 %s24, %s31
      %p37 = scmp.eq.s32.totalorder %s36, 0
      %s39 = sadd.s32 %s38, 1
      %s40 = scalar_select %p37, %s38, %s39
      %p43 = pneg %p37
      %p44 = scmp.eq.s32.totalorder %s16, 1
      %p45 = por %p43, %p44
      %p46 = scmp.ne.s32.totalorder %s38, %s41
      %p47 = scmp.eq.s32.totalorder %s16, 0
      %p48 = por %p46, %p47
      %p49 = scmp.ne.s32.totalorder %s38, %s41
      %p50 = scmp.eq.s32.totalorder %s21, 1
      %p51 = por %p49, %p50
      %p52 = scmp.ne.s32.totalorder %s41, %s42
      %p53 = scmp.eq.s32.totalorder %s21, 0
      %p54 = por %p52, %p53
      %p55 = scmp.ne.s32.totalorder %s41, %s42
      %p56 = scmp.eq.s32.totalorder %s22, 1
      %p57 = por %p55, %p56
      %p59 = scmp.ne.s32.totalorder %s42, %s58
      %p60 = scmp.eq.s32.totalorder %s22, 0
      %p61 = por %p59, %p60
      %s62 = ssub.s32 %s23, %s35
      %p63 = scmp.eq.s32.totalorder %s62, 0
      %s65 = sadd.s32 %s64, 1
      %s66 = scalar_select %p63, %s64, %s65
      %p69 = pneg %p63
      %p70 = scmp.eq.s32.totalorder %s16, 1
      %p71 = por %p69, %p70
      %p72 = scmp.ne.s32.totalorder %s64, %s67
      %p73 = scmp.eq.s32.totalorder %s16, 0
      %p74 = por %p72, %p73
      %p75 = scmp.ne.s32.totalorder %s64, %s67
      %p76 = scmp.eq.s32.totalorder %s21, 1
      %p77 = por %p75, %p76
      %p78 = scmp.ne.s32.totalorder %s67, %s68
      %p79 = scmp.eq.s32.totalorder %s21, 0
      %p80 = por %p78, %p79
      %p81 = scmp.ne.s32.totalorder %s67, %s68
      %p82 = scmp.eq.s32.totalorder %s22, 1
      %p83 = por %p81, %p82
      %p85 = scmp.ne.s32.totalorder %s68, %s84
      %p86 = scmp.eq.s32.totalorder %s22, 0
      %p87 = por %p85, %p86
      %s88 = ssub.s32 %s23, %s35
      %p89 = scmp.eq.s32.totalorder %s88, 0
      %s91 = sadd.s32 %s90, 1
      %s92 = scalar_select %p89, %s90, %s91
      %p95 = pneg %p89
      %p96 = scmp.eq.s32.totalorder %s16, 1
      %p97 = por %p95, %p96
      %p98 = scmp.ne.s32.totalorder %s90, %s93
      %p99 = scmp.eq.s32.totalorder %s16, 0
      %p100 = por %p98, %p99
      %p101 = scmp.ne.s32.totalorder %s90, %s93
      %p102 = scmp.eq.s32.totalorder %s21, 1
      %p103 = por %p101, %p102
      %p104 = scmp.ne.s32.totalorder %s93, %s94
      %p105 = scmp.eq.s32.totalorder %s21, 0
      %p106 = por %p104, %p105
      %p107 = scmp.ne.s32.totalorder %s93, %s94
      %p108 = scmp.eq.s32.totalorder %s22, 1
      %p109 = por %p107, %p108
      %p111 = scmp.ne.s32.totalorder %s94, %s110
      %p112 = scmp.eq.s32.totalorder %s22, 0
      %p113 = por %p111, %p112
      %s114 = ssub.s32 %s24, %s31
      %s115 = ssub.s32 %s23, %s35
      %s116 = sor.u32 %s114, %s115
      %p117 = scmp.eq.s32.totalorder %s116, 0
      %s119 = sadd.s32 %s118, 1
      %s120 = scalar_select %p117, %s118, %s119
      %p123 = pneg %p117
      %p124 = scmp.eq.s32.totalorder %s16, 1
      %p125 = por %p123, %p124
      %p126 = scmp.ne.s32.totalorder %s118, %s121
      %p127 = scmp.eq.s32.totalorder %s16, 0
      %p128 = por %p126, %p127
      %p129 = scmp.ne.s32.totalorder %s118, %s121
      %p130 = scmp.eq.s32.totalorder %s21, 1
      %p131 = por %p129, %p130
      %p132 = scmp.ne.s32.totalorder %s121, %s122
      %p133 = scmp.eq.s32.totalorder %s21, 0
      %p134 = por %p132, %p133
      %p135 = scmp.ne.s32.totalorder %s121, %s122
      %p136 = scmp.eq.s32.totalorder %s22, 1
      %p137 = por %p135, %p136
      %p139 = scmp.ne.s32.totalorder %s122, %s138
      %p140 = scmp.eq.s32.totalorder %s22, 0
      %p141 = por %p139, %p140
      %p142 = scmp.le.s32.totalorder 1, %s16
      %p143 = scmp.lt.s32.totalorder %s16, 3
      %p144 = pnand %p142, %p143
      %p145 = pneg %p144
      // Predicated region
      $region9: #{_gating_linear.1} parent=5 // pred_check
        _
      $region10: #{_gating_linear.1} parent=5 // pred_check_branch
        %147 = sbr.rel (%p144) target = $region12
      $region11: #{_gating_linear.1} parent=5 // pred_region
        %s148 = ssub.s32 %s16, 1
        // Predicated region
        $region13: #{_gating_linear.1} parent=11 // pred_check
          %p149 = pneg %p54
        $region14: #{_gating_linear.1} parent=11 // pred_check_branch
          %151 = sbr.rel (%p149) target = $region16
        $region15: #{_gating_linear.1} parent=11 // pred_region
          %s153 = ssub.s32 768, 768
          %154 = vsyncadd [#allocation3], %s153
          %s155 = smul.addr %s26, 6
          %s156 = smul.addr %s155, 128
          %s157 = scalar_lea.hbm %s0, %s156
          %s159 = sshll.u32 [#allocation2], 4
          %s160 = int_to_ptr.vmem [resolvable:$true] %s159
          %162 = dma.hbm_to_vmem [thread:$0]  %s157, 768, %s160, [#allocation3]
        $region16: #{_gating_linear.1} parent=11 // pred_fallthru
          _
      $region12: #{_gating_linear.1} parent=5 // pred_fallthru
        _
      %p163 = scmp.lt.s32.totalorder %s16, 2
      // Predicated region
      $region17: #{_gating_linear.1} parent=5 // pred_check
        %p164 = pneg %p163
      $region18: #{_gating_linear.1} parent=5 // pred_check_branch
        %166 = sbr.rel (%p164) target = $region20
      $region19: #{_gating_linear.1} parent=5 // pred_region
        // Predicated region
        $region21: #{_gating_linear.1} parent=19 // pred_check
          %p167 = pneg %p74
        $region22: #{_gating_linear.1} parent=19 // pred_check_branch
          %169 = sbr.rel (%p167) target = $region24
        $region23: #{_gating_linear.1} parent=19 // pred_region
          %s170 = sand.u32 %s16, 1
          %s171 = scalar_lea.sflag [#allocation6], %s170
          %s172 = sand.u32 %s64, 1
          %s173 = smul.addr %s172, 3072
          %s174 = scalar_lea.vmem [#allocation5], %s173
          %s175 = smul.u32 4, %s23
          %s177 = ssub.s32 49152, 49152
          %178 = vsyncadd %s171, %s177
          %s179 = smul.addr %s175, 128
          %s180 = scalar_lea.hbm %s1, %s179
          %s181 = sshll.u32 %s174, 4
          %s182 = int_to_ptr.vmem [resolvable:$true] %s181
          %187 = dma.hbm_to_vmem [thread:$0]  %s180, 49152, %s182, %s171, 1024, 512, 32
        $region24: #{_gating_linear.1} parent=19 // pred_fallthru
          _
        // Predicated region
        $region25: #{_gating_linear.1} parent=19 // pred_check
          %p188 = pneg %p100
        $region26: #{_gating_linear.1} parent=19 // pred_check_branch
          %190 = sbr.rel (%p188) target = $region28
        $region27: #{_gating_linear.1} parent=19 // pred_region
          %s191 = sand.u32 %s16, 1
          %s192 = scalar_lea.sflag [#allocation6], %s191
          %s193 = sand.u32 %s90, 1
          %s194 = smul.addr %s193, 4
          %s195 = scalar_lea.vmem [#allocation7], %s194
          %s196 = smul.u32 4, %s23
          %s198 = ssub.s32 64, 64
          %199 = vsyncadd %s192, %s198
          %s200 = smul.addr %s196, 16
          %s201 = scalar_lea.hbm %s2, %s200
          %s203 = sshll.u32 %s195, 4
          %s204 = int_to_ptr.vmem [resolvable:$true] %s203
          %206 = dma.hbm_to_vmem [thread:$0]  %s201, 64, %s204, %s192
        $region28: #{_gating_linear.1} parent=19 // pred_fallthru
          _
      $region20: #{_gating_linear.1} parent=5 // pred_fallthru
        _
      %p207 = scmp.le.s32.totalorder 1, %s16
      %p208 = scmp.lt.s32.totalorder %s16, 3
      %p209 = pnand %p207, %p208
      %p210 = pneg %p209
      // Predicated region
      $region29: #{_gating_linear.1} parent=5 // pred_check
        _
      $region30: #{_gating_linear.1} parent=5 // pred_check_branch
        %212 = sbr.rel (%p209) target = $region32
      $region31: #{_gating_linear.1} parent=5 // pred_region
        %s213 = ssub.s32 %s16, 1
        // Predicated region
        $region33: #{_gating_linear.1} parent=31 // pred_check
          %p214 = pneg %p54
        $region34: #{_gating_linear.1} parent=31 // pred_check_branch
          %216 = sbr.rel (%p214) target = $region36
        $region35: #{_gating_linear.1} parent=31 // pred_region
          %217 = dma.done [#allocation3], 768
        $region36: #{_gating_linear.1} parent=31 // pred_fallthru
          _
        %s218 = sand.u32 %s21, 1
        %s219 = scalar_lea.sflag [#allocation6], %s218
        %s220 = sand.u32 %s67, 1
        %s221 = smul.addr %s220, 3072
        %s222 = scalar_lea.vmem [#allocation5], %s221
        // Predicated region
        $region37: #{_gating_linear.1} parent=31 // pred_check
          %p223 = pneg %p80
        $region38: #{_gating_linear.1} parent=31 // pred_check_branch
          %225 = sbr.rel (%p223) target = $region40
        $region39: #{_gating_linear.1} parent=31 // pred_region
          %226 = dma.done %s219, 49152
        $region40: #{_gating_linear.1} parent=31 // pred_fallthru
          _
        %s227 = sand.u32 %s21, 1
        %s228 = scalar_lea.sflag [#allocation6], %s227
        %s229 = sand.u32 %s93, 1
        %s230 = smul.addr %s229, 4
        %s231 = scalar_lea.vmem [#allocation7], %s230
        // Predicated region
        $region41: #{_gating_linear.1} parent=31 // pred_check
          %p232 = pneg %p106
        $region42: #{_gating_linear.1} parent=31 // pred_check_branch
          %234 = sbr.rel (%p232) target = $region44
        $region43: #{_gating_linear.1} parent=31 // pred_region
          %235 = dma.done %s228, 64
        $region44: #{_gating_linear.1} parent=31 // pred_fallthru
          _
        %p236 = pneg %p54
        %p237 = pneg %p51
        %s238 = sand.u32 %s21, 1
        %s239 = scalar_lea.sflag [#allocation6], %s238
        %s240 = sand.u32 %s67, 1
        %s241 = smul.addr %s240, 3072
        %s242 = scalar_lea.vmem [#allocation5], %s241
        %p243 = pneg %p80
        %p244 = pneg %p77
        %s245 = sand.u32 %s21, 1
        %s246 = scalar_lea.sflag [#allocation6], %s245
        %s247 = sand.u32 %s93, 1
        %s248 = smul.addr %s247, 4
        %s249 = scalar_lea.vmem [#allocation7], %s248
        %p250 = pneg %p106
        %p251 = pneg %p103
        %p252 = pneg %p134
        %p253 = pneg %p131
        %s254 = sand.u32 %s121, 1
        %s255 = scalar_lea.sflag [#allocation4], %s254
        %s256 = sand.u32 %s121, 1
        %s257 = smul.addr %s256, 32
        %s258 = scalar_lea.vmem [#allocation8], %s257
        %s259 = smul.u32 4, %s25
        %s260 = smul.u32 4, %s25
        %s261 = smul.u32 4, %s25
        %v262 = vld [vmem:[#allocation2] sm:$0xff]
        %v263 = vld [vmem:[#allocation2 + $0x8] sm:$0xff]
        %v264 = vld [vmem:[#allocation2 + $0x10] sm:$0xff]
        %v265 = vld [vmem:[#allocation2 + $0x18] sm:$0xff]
        %v266 = vld [vmem:[#allocation2 + $0x20] sm:$0xff]
        %v267 = vld [vmem:[#allocation2 + $0x28] sm:$0xff]
        %v268 = vld [vmem:[%s222] sm:$0xff]
        %v269 = vld [vmem:[%s222 + $0x8] sm:$0xff]
        %v270 = vld [vmem:[%s222 + $0x10] sm:$0xff]
        %v271 = vld [vmem:[%s222 + $0x18] sm:$0xff]
        %v272 = vld [vmem:[%s222 + $0x20] sm:$0xff]
        %v273 = vld [vmem:[%s222 + $0x28] sm:$0xff]
        %v274 = vld [vmem:[%s222 + $0x30] sm:$0xff]
        %v275 = vld [vmem:[%s222 + $0x38] sm:$0xff]
        %v276 = vld [vmem:[%s222 + $0x40] sm:$0xff]
        %v277 = vld [vmem:[%s222 + $0x48] sm:$0xff]
        %v278 = vld [vmem:[%s222 + $0x50] sm:$0xff]
        %v279 = vld [vmem:[%s222 + $0x58] sm:$0xff]
        %v280 = vld [vmem:[%s222 + $0x60] sm:$0xff]
        %v281 = vld [vmem:[%s222 + $0x68] sm:$0xff]
        %v282 = vld [vmem:[%s222 + $0x70] sm:$0xff]
        %v283 = vld [vmem:[%s222 + $0x78] sm:$0xff]
        %v284 = vld [vmem:[%s222 + $0x80] sm:$0xff]
        %v285 = vld [vmem:[%s222 + $0x88] sm:$0xff]
        %v286 = vld [vmem:[%s222 + $0x90] sm:$0xff]
        %v287 = vld [vmem:[%s222 + $0x98] sm:$0xff]
        %v288 = vld [vmem:[%s222 + $0xa0] sm:$0xff]
        %v289 = vld [vmem:[%s222 + $0xa8] sm:$0xff]
        %v290 = vld [vmem:[%s222 + $0xb0] sm:$0xff]
        %v291 = vld [vmem:[%s222 + $0xb8] sm:$0xff]
        %v292 = vld [vmem:[%s222 + $0xc0] sm:$0xff]
        %v293 = vld [vmem:[%s222 + $0xc8] sm:$0xff]
        %v294 = vld [vmem:[%s222 + $0xd0] sm:$0xff]
        %v295 = vld [vmem:[%s222 + $0xd8] sm:$0xff]
        %v296 = vld [vmem:[%s222 + $0xe0] sm:$0xff]
        %v297 = vld [vmem:[%s222 + $0xe8] sm:$0xff]
        %v298 = vld [vmem:[%s222 + $0xf0] sm:$0xff]
        %v299 = vld [vmem:[%s222 + $0xf8] sm:$0xff]
        %v300 = vld [vmem:[%s222 + $0x100] sm:$0xff]
        %v301 = vld [vmem:[%s222 + $0x108] sm:$0xff]
        %v302 = vld [vmem:[%s222 + $0x110] sm:$0xff]
        %v303 = vld [vmem:[%s222 + $0x118] sm:$0xff]
        %v304 = vld [vmem:[%s222 + $0x120] sm:$0xff]
        %v305 = vld [vmem:[%s222 + $0x128] sm:$0xff]
        %v306 = vld [vmem:[%s222 + $0x130] sm:$0xff]
        %v307 = vld [vmem:[%s222 + $0x138] sm:$0xff]
        %v308 = vld [vmem:[%s222 + $0x140] sm:$0xff]
        %v309 = vld [vmem:[%s222 + $0x148] sm:$0xff]
        %v310 = vld [vmem:[%s222 + $0x150] sm:$0xff]
        %v311 = vld [vmem:[%s222 + $0x158] sm:$0xff]
        %v312 = vld [vmem:[%s222 + $0x160] sm:$0xff]
        %v313 = vld [vmem:[%s222 + $0x168] sm:$0xff]
        %v314 = vld [vmem:[%s222 + $0x170] sm:$0xff]
        %v315 = vld [vmem:[%s222 + $0x178] sm:$0xff]
        %v316 = vld [vmem:[%s222 + $0x180] sm:$0xff]
        %v317 = vld [vmem:[%s222 + $0x188] sm:$0xff]
        %v318 = vld [vmem:[%s222 + $0x190] sm:$0xff]
        %v319 = vld [vmem:[%s222 + $0x198] sm:$0xff]
        %v320 = vld [vmem:[%s222 + $0x1a0] sm:$0xff]
        %v321 = vld [vmem:[%s222 + $0x1a8] sm:$0xff]
        %v322 = vld [vmem:[%s222 + $0x1b0] sm:$0xff]
        %v323 = vld [vmem:[%s222 + $0x1b8] sm:$0xff]
        %v324 = vld [vmem:[%s222 + $0x1c0] sm:$0xff]
        %v325 = vld [vmem:[%s222 + $0x1c8] sm:$0xff]
        %v326 = vld [vmem:[%s222 + $0x1d0] sm:$0xff]
        %v327 = vld [vmem:[%s222 + $0x1d8] sm:$0xff]
        %v328 = vld [vmem:[%s222 + $0x1e0] sm:$0xff]
        %v329 = vld [vmem:[%s222 + $0x1e8] sm:$0xff]
        %v330 = vld [vmem:[%s222 + $0x1f0] sm:$0xff]
        %v331 = vld [vmem:[%s222 + $0x1f8] sm:$0xff]
        %v332 = vld [vmem:[%s222 + $0x200] sm:$0xff]
        %v333 = vld [vmem:[%s222 + $0x208] sm:$0xff]
        %v334 = vld [vmem:[%s222 + $0x210] sm:$0xff]
        %v335 = vld [vmem:[%s222 + $0x218] sm:$0xff]
        %v336 = vld [vmem:[%s222 + $0x220] sm:$0xff]
        %v337 = vld [vmem:[%s222 + $0x228] sm:$0xff]
        %v338 = vld [vmem:[%s222 + $0x230] sm:$0xff]
        %v339 = vld [vmem:[%s222 + $0x238] sm:$0xff]
        %v340 = vld [vmem:[%s222 + $0x240] sm:$0xff]
        %v341 = vld [vmem:[%s222 + $0x248] sm:$0xff]
        %v342 = vld [vmem:[%s222 + $0x250] sm:$0xff]
        %v343 = vld [vmem:[%s222 + $0x258] sm:$0xff]
        %v344 = vld [vmem:[%s222 + $0x260] sm:$0xff]
        %v345 = vld [vmem:[%s222 + $0x268] sm:$0xff]
        %v346 = vld [vmem:[%s222 + $0x270] sm:$0xff]
        %v347 = vld [vmem:[%s222 + $0x278] sm:$0xff]
        %v348 = vld [vmem:[%s222 + $0x280] sm:$0xff]
        %v349 = vld [vmem:[%s222 + $0x288] sm:$0xff]
        %v350 = vld [vmem:[%s222 + $0x290] sm:$0xff]
        %v351 = vld [vmem:[%s222 + $0x298] sm:$0xff]
        %v352 = vld [vmem:[%s222 + $0x2a0] sm:$0xff]
        %v353 = vld [vmem:[%s222 + $0x2a8] sm:$0xff]
        %v354 = vld [vmem:[%s222 + $0x2b0] sm:$0xff]
        %v355 = vld [vmem:[%s222 + $0x2b8] sm:$0xff]
        %v356 = vld [vmem:[%s222 + $0x2c0] sm:$0xff]
        %v357 = vld [vmem:[%s222 + $0x2c8] sm:$0xff]
        %v358 = vld [vmem:[%s222 + $0x2d0] sm:$0xff]
        %v359 = vld [vmem:[%s222 + $0x2d8] sm:$0xff]
        %v360 = vld [vmem:[%s222 + $0x2e0] sm:$0xff]
        %v361 = vld [vmem:[%s222 + $0x2e8] sm:$0xff]
        %v362 = vld [vmem:[%s222 + $0x2f0] sm:$0xff]
        %v363 = vld [vmem:[%s222 + $0x2f8] sm:$0xff]
        %v364 = vld [vmem:[%s222 + $0x300] sm:$0xff]
        %v365 = vld [vmem:[%s222 + $0x308] sm:$0xff]
        %v366 = vld [vmem:[%s222 + $0x310] sm:$0xff]
        %v367 = vld [vmem:[%s222 + $0x318] sm:$0xff]
        %v368 = vld [vmem:[%s222 + $0x320] sm:$0xff]
        %v369 = vld [vmem:[%s222 + $0x328] sm:$0xff]
        %v370 = vld [vmem:[%s222 + $0x330] sm:$0xff]
        %v371 = vld [vmem:[%s222 + $0x338] sm:$0xff]
        %v372 = vld [vmem:[%s222 + $0x340] sm:$0xff]
        %v373 = vld [vmem:[%s222 + $0x348] sm:$0xff]
        %v374 = vld [vmem:[%s222 + $0x350] sm:$0xff]
        %v375 = vld [vmem:[%s222 + $0x358] sm:$0xff]
        %v376 = vld [vmem:[%s222 + $0x360] sm:$0xff]
        %v377 = vld [vmem:[%s222 + $0x368] sm:$0xff]
        %v378 = vld [vmem:[%s222 + $0x370] sm:$0xff]
        %v379 = vld [vmem:[%s222 + $0x378] sm:$0xff]
        %v380 = vld [vmem:[%s222 + $0x380] sm:$0xff]
        %v381 = vld [vmem:[%s222 + $0x388] sm:$0xff]
        %v382 = vld [vmem:[%s222 + $0x390] sm:$0xff]
        %v383 = vld [vmem:[%s222 + $0x398] sm:$0xff]
        %v384 = vld [vmem:[%s222 + $0x3a0] sm:$0xff]
        %v385 = vld [vmem:[%s222 + $0x3a8] sm:$0xff]
        %v386 = vld [vmem:[%s222 + $0x3b0] sm:$0xff]
        %v387 = vld [vmem:[%s222 + $0x3b8] sm:$0xff]
        %v388 = vld [vmem:[%s222 + $0x3c0] sm:$0xff]
        %v389 = vld [vmem:[%s222 + $0x3c8] sm:$0xff]
        %v390 = vld [vmem:[%s222 + $0x3d0] sm:$0xff]
        %v391 = vld [vmem:[%s222 + $0x3d8] sm:$0xff]
        %v392 = vld [vmem:[%s222 + $0x3e0] sm:$0xff]
        %v393 = vld [vmem:[%s222 + $0x3e8] sm:$0xff]
        %v394 = vld [vmem:[%s222 + $0x3f0] sm:$0xff]
        %v395 = vld [vmem:[%s222 + $0x3f8] sm:$0xff]
        %v396 = vld [vmem:[%s222 + $0x400] sm:$0xff]
        %v397 = vld [vmem:[%s222 + $0x408] sm:$0xff]
        %v398 = vld [vmem:[%s222 + $0x410] sm:$0xff]
        %v399 = vld [vmem:[%s222 + $0x418] sm:$0xff]
        %v400 = vld [vmem:[%s222 + $0x420] sm:$0xff]
        %v401 = vld [vmem:[%s222 + $0x428] sm:$0xff]
        %v402 = vld [vmem:[%s222 + $0x430] sm:$0xff]
        %v403 = vld [vmem:[%s222 + $0x438] sm:$0xff]
        %v404 = vld [vmem:[%s222 + $0x440] sm:$0xff]
        %v405 = vld [vmem:[%s222 + $0x448] sm:$0xff]
        %v406 = vld [vmem:[%s222 + $0x450] sm:$0xff]
        %v407 = vld [vmem:[%s222 + $0x458] sm:$0xff]
        %v408 = vld [vmem:[%s222 + $0x460] sm:$0xff]
        %v409 = vld [vmem:[%s222 + $0x468] sm:$0xff]
        %v410 = vld [vmem:[%s222 + $0x470] sm:$0xff]
        %v411 = vld [vmem:[%s222 + $0x478] sm:$0xff]
        %v412 = vld [vmem:[%s222 + $0x480] sm:$0xff]
        %v413 = vld [vmem:[%s222 + $0x488] sm:$0xff]
        %v414 = vld [vmem:[%s222 + $0x490] sm:$0xff]
        %v415 = vld [vmem:[%s222 + $0x498] sm:$0xff]
        %v416 = vld [vmem:[%s222 + $0x4a0] sm:$0xff]
        %v417 = vld [vmem:[%s222 + $0x4a8] sm:$0xff]
        %v418 = vld [vmem:[%s222 + $0x4b0] sm:$0xff]
        %v419 = vld [vmem:[%s222 + $0x4b8] sm:$0xff]
        %v420 = vld [vmem:[%s222 + $0x4c0] sm:$0xff]
        %v421 = vld [vmem:[%s222 + $0x4c8] sm:$0xff]
        %v422 = vld [vmem:[%s222 + $0x4d0] sm:$0xff]
        %v423 = vld [vmem:[%s222 + $0x4d8] sm:$0xff]
        %v424 = vld [vmem:[%s222 + $0x4e0] sm:$0xff]
        %v425 = vld [vmem:[%s222 + $0x4e8] sm:$0xff]
        %v426 = vld [vmem:[%s222 + $0x4f0] sm:$0xff]
        %v427 = vld [vmem:[%s222 + $0x4f8] sm:$0xff]
        %v428 = vld [vmem:[%s222 + $0x500] sm:$0xff]
        %v429 = vld [vmem:[%s222 + $0x508] sm:$0xff]
        %v430 = vld [vmem:[%s222 + $0x510] sm:$0xff]
        %v431 = vld [vmem:[%s222 + $0x518] sm:$0xff]
        %v432 = vld [vmem:[%s222 + $0x520] sm:$0xff]
        %v433 = vld [vmem:[%s222 + $0x528] sm:$0xff]
        %v434 = vld [vmem:[%s222 + $0x530] sm:$0xff]
        %v435 = vld [vmem:[%s222 + $0x538] sm:$0xff]
        %v436 = vld [vmem:[%s222 + $0x540] sm:$0xff]
        %v437 = vld [vmem:[%s222 + $0x548] sm:$0xff]
        %v438 = vld [vmem:[%s222 + $0x550] sm:$0xff]
        %v439 = vld [vmem:[%s222 + $0x558] sm:$0xff]
        %v440 = vld [vmem:[%s222 + $0x560] sm:$0xff]
        %v441 = vld [vmem:[%s222 + $0x568] sm:$0xff]
        %v442 = vld [vmem:[%s222 + $0x570] sm:$0xff]
        %v443 = vld [vmem:[%s222 + $0x578] sm:$0xff]
        %v444 = vld [vmem:[%s222 + $0x580] sm:$0xff]
        %v445 = vld [vmem:[%s222 + $0x588] sm:$0xff]
        %v446 = vld [vmem:[%s222 + $0x590] sm:$0xff]
        %v447 = vld [vmem:[%s222 + $0x598] sm:$0xff]
        %v448 = vld [vmem:[%s222 + $0x5a0] sm:$0xff]
        %v449 = vld [vmem:[%s222 + $0x5a8] sm:$0xff]
        %v450 = vld [vmem:[%s222 + $0x5b0] sm:$0xff]
        %v451 = vld [vmem:[%s222 + $0x5b8] sm:$0xff]
        %v452 = vld [vmem:[%s222 + $0x5c0] sm:$0xff]
        %v453 = vld [vmem:[%s222 + $0x5c8] sm:$0xff]
        %v454 = vld [vmem:[%s222 + $0x5d0] sm:$0xff]
        %v455 = vld [vmem:[%s222 + $0x5d8] sm:$0xff]
        %v456 = vld [vmem:[%s222 + $0x5e0] sm:$0xff]
        %v457 = vld [vmem:[%s222 + $0x5e8] sm:$0xff]
        %v458 = vld [vmem:[%s222 + $0x5f0] sm:$0xff]
        %v459 = vld [vmem:[%s222 + $0x5f8] sm:$0xff]
        %v460 = vld [vmem:[%s222 + $0x600] sm:$0xff]
        %v461 = vld [vmem:[%s222 + $0x608] sm:$0xff]
        %v462 = vld [vmem:[%s222 + $0x610] sm:$0xff]
        %v463 = vld [vmem:[%s222 + $0x618] sm:$0xff]
        %v464 = vld [vmem:[%s222 + $0x620] sm:$0xff]
        %v465 = vld [vmem:[%s222 + $0x628] sm:$0xff]
        %v466 = vld [vmem:[%s222 + $0x630] sm:$0xff]
        %v467 = vld [vmem:[%s222 + $0x638] sm:$0xff]
        %v468 = vld [vmem:[%s222 + $0x640] sm:$0xff]
        %v469 = vld [vmem:[%s222 + $0x648] sm:$0xff]
        %v470 = vld [vmem:[%s222 + $0x650] sm:$0xff]
        %v471 = vld [vmem:[%s222 + $0x658] sm:$0xff]
        %v472 = vld [vmem:[%s222 + $0x660] sm:$0xff]
        %v473 = vld [vmem:[%s222 + $0x668] sm:$0xff]
        %v474 = vld [vmem:[%s222 + $0x670] sm:$0xff]
        %v475 = vld [vmem:[%s222 + $0x678] sm:$0xff]
        %v476 = vld [vmem:[%s222 + $0x680] sm:$0xff]
        %v477 = vld [vmem:[%s222 + $0x688] sm:$0xff]
        %v478 = vld [vmem:[%s222 + $0x690] sm:$0xff]
        %v479 = vld [vmem:[%s222 + $0x698] sm:$0xff]
        %v480 = vld [vmem:[%s222 + $0x6a0] sm:$0xff]
        %v481 = vld [vmem:[%s222 + $0x6a8] sm:$0xff]
        %v482 = vld [vmem:[%s222 + $0x6b0] sm:$0xff]
        %v483 = vld [vmem:[%s222 + $0x6b8] sm:$0xff]
        %v484 = vld [vmem:[%s222 + $0x6c0] sm:$0xff]
        %v485 = vld [vmem:[%s222 + $0x6c8] sm:$0xff]
        %v486 = vld [vmem:[%s222 + $0x6d0] sm:$0xff]
        %v487 = vld [vmem:[%s222 + $0x6d8] sm:$0xff]
        %v488 = vld [vmem:[%s222 + $0x6e0] sm:$0xff]
        %v489 = vld [vmem:[%s222 + $0x6e8] sm:$0xff]
        %v490 = vld [vmem:[%s222 + $0x6f0] sm:$0xff]
        %v491 = vld [vmem:[%s222 + $0x6f8] sm:$0xff]
        %v492 = vld [vmem:[%s222 + $0x700] sm:$0xff]
        %v493 = vld [vmem:[%s222 + $0x708] sm:$0xff]
        %v494 = vld [vmem:[%s222 + $0x710] sm:$0xff]
        %v495 = vld [vmem:[%s222 + $0x718] sm:$0xff]
        %v496 = vld [vmem:[%s222 + $0x720] sm:$0xff]
        %v497 = vld [vmem:[%s222 + $0x728] sm:$0xff]
        %v498 = vld [vmem:[%s222 + $0x730] sm:$0xff]
        %v499 = vld [vmem:[%s222 + $0x738] sm:$0xff]
        %v500 = vld [vmem:[%s222 + $0x740] sm:$0xff]
        %v501 = vld [vmem:[%s222 + $0x748] sm:$0xff]
        %v502 = vld [vmem:[%s222 + $0x750] sm:$0xff]
        %v503 = vld [vmem:[%s222 + $0x758] sm:$0xff]
        %v504 = vld [vmem:[%s222 + $0x760] sm:$0xff]
        %v505 = vld [vmem:[%s222 + $0x768] sm:$0xff]
        %v506 = vld [vmem:[%s222 + $0x770] sm:$0xff]
        %v507 = vld [vmem:[%s222 + $0x778] sm:$0xff]
        %v508 = vld [vmem:[%s222 + $0x780] sm:$0xff]
        %v509 = vld [vmem:[%s222 + $0x788] sm:$0xff]
        %v510 = vld [vmem:[%s222 + $0x790] sm:$0xff]
        %v511 = vld [vmem:[%s222 + $0x798] sm:$0xff]
        %v512 = vld [vmem:[%s222 + $0x7a0] sm:$0xff]
        %v513 = vld [vmem:[%s222 + $0x7a8] sm:$0xff]
        %v514 = vld [vmem:[%s222 + $0x7b0] sm:$0xff]
        %v515 = vld [vmem:[%s222 + $0x7b8] sm:$0xff]
        %v516 = vld [vmem:[%s222 + $0x7c0] sm:$0xff]
        %v517 = vld [vmem:[%s222 + $0x7c8] sm:$0xff]
        %v518 = vld [vmem:[%s222 + $0x7d0] sm:$0xff]
        %v519 = vld [vmem:[%s222 + $0x7d8] sm:$0xff]
        %v520 = vld [vmem:[%s222 + $0x7e0] sm:$0xff]
        %v521 = vld [vmem:[%s222 + $0x7e8] sm:$0xff]
        %v522 = vld [vmem:[%s222 + $0x7f0] sm:$0xff]
        %v523 = vld [vmem:[%s222 + $0x7f8] sm:$0xff]
        %v524 = vld [vmem:[%s222 + $0x800] sm:$0xff]
        %v525 = vld [vmem:[%s222 + $0x808] sm:$0xff]
        %v526 = vld [vmem:[%s222 + $0x810] sm:$0xff]
        %v527 = vld [vmem:[%s222 + $0x818] sm:$0xff]
        %v528 = vld [vmem:[%s222 + $0x820] sm:$0xff]
        %v529 = vld [vmem:[%s222 + $0x828] sm:$0xff]
        %v530 = vld [vmem:[%s222 + $0x830] sm:$0xff]
        %v531 = vld [vmem:[%s222 + $0x838] sm:$0xff]
        %v532 = vld [vmem:[%s222 + $0x840] sm:$0xff]
        %v533 = vld [vmem:[%s222 + $0x848] sm:$0xff]
        %v534 = vld [vmem:[%s222 + $0x850] sm:$0xff]
        %v535 = vld [vmem:[%s222 + $0x858] sm:$0xff]
        %v536 = vld [vmem:[%s222 + $0x860] sm:$0xff]
        %v537 = vld [vmem:[%s222 + $0x868] sm:$0xff]
        %v538 = vld [vmem:[%s222 + $0x870] sm:$0xff]
        %v539 = vld [vmem:[%s222 + $0x878] sm:$0xff]
        %v540 = vld [vmem:[%s222 + $0x880] sm:$0xff]
        %v541 = vld [vmem:[%s222 + $0x888] sm:$0xff]
        %v542 = vld [vmem:[%s222 + $0x890] sm:$0xff]
        %v543 = vld [vmem:[%s222 + $0x898] sm:$0xff]
        %v544 = vld [vmem:[%s222 + $0x8a0] sm:$0xff]
        %v545 = vld [vmem:[%s222 + $0x8a8] sm:$0xff]
        %v546 = vld [vmem:[%s222 + $0x8b0] sm:$0xff]
        %v547 = vld [vmem:[%s222 + $0x8b8] sm:$0xff]
        %v548 = vld [vmem:[%s222 + $0x8c0] sm:$0xff]
        %v549 = vld [vmem:[%s222 + $0x8c8] sm:$0xff]
        %v550 = vld [vmem:[%s222 + $0x8d0] sm:$0xff]
        %v551 = vld [vmem:[%s222 + $0x8d8] sm:$0xff]
        %v552 = vld [vmem:[%s222 + $0x8e0] sm:$0xff]
        %v553 = vld [vmem:[%s222 + $0x8e8] sm:$0xff]
        %v554 = vld [vmem:[%s222 + $0x8f0] sm:$0xff]
        %v555 = vld [vmem:[%s222 + $0x8f8] sm:$0xff]
        %v556 = vld [vmem:[%s222 + $0x900] sm:$0xff]
        %v557 = vld [vmem:[%s222 + $0x908] sm:$0xff]
        %v558 = vld [vmem:[%s222 + $0x910] sm:$0xff]
        %v559 = vld [vmem:[%s222 + $0x918] sm:$0xff]
        %v560 = vld [vmem:[%s222 + $0x920] sm:$0xff]
        %v561 = vld [vmem:[%s222 + $0x928] sm:$0xff]
        %v562 = vld [vmem:[%s222 + $0x930] sm:$0xff]
        %v563 = vld [vmem:[%s222 + $0x938] sm:$0xff]
        %v564 = vld [vmem:[%s222 + $0x940] sm:$0xff]
        %v565 = vld [vmem:[%s222 + $0x948] sm:$0xff]
        %v566 = vld [vmem:[%s222 + $0x950] sm:$0xff]
        %v567 = vld [vmem:[%s222 + $0x958] sm:$0xff]
        %v568 = vld [vmem:[%s222 + $0x960] sm:$0xff]
        %v569 = vld [vmem:[%s222 + $0x968] sm:$0xff]
        %v570 = vld [vmem:[%s222 + $0x970] sm:$0xff]
        %v571 = vld [vmem:[%s222 + $0x978] sm:$0xff]
        %v572 = vld [vmem:[%s222 + $0x980] sm:$0xff]
        %v573 = vld [vmem:[%s222 + $0x988] sm:$0xff]
        %v574 = vld [vmem:[%s222 + $0x990] sm:$0xff]
        %v575 = vld [vmem:[%s222 + $0x998] sm:$0xff]
        %v576 = vld [vmem:[%s222 + $0x9a0] sm:$0xff]
        %v577 = vld [vmem:[%s222 + $0x9a8] sm:$0xff]
        %v578 = vld [vmem:[%s222 + $0x9b0] sm:$0xff]
        %v579 = vld [vmem:[%s222 + $0x9b8] sm:$0xff]
        %v580 = vld [vmem:[%s222 + $0x9c0] sm:$0xff]
        %v581 = vld [vmem:[%s222 + $0x9c8] sm:$0xff]
        %v582 = vld [vmem:[%s222 + $0x9d0] sm:$0xff]
        %v583 = vld [vmem:[%s222 + $0x9d8] sm:$0xff]
        %v584 = vld [vmem:[%s222 + $0x9e0] sm:$0xff]
        %v585 = vld [vmem:[%s222 + $0x9e8] sm:$0xff]
        %v586 = vld [vmem:[%s222 + $0x9f0] sm:$0xff]
        %v587 = vld [vmem:[%s222 + $0x9f8] sm:$0xff]
        %v588 = vld [vmem:[%s222 + $0xa00] sm:$0xff]
        %v589 = vld [vmem:[%s222 + $0xa08] sm:$0xff]
        %v590 = vld [vmem:[%s222 + $0xa10] sm:$0xff]
        %v591 = vld [vmem:[%s222 + $0xa18] sm:$0xff]
        %v592 = vld [vmem:[%s222 + $0xa20] sm:$0xff]
        %v593 = vld [vmem:[%s222 + $0xa28] sm:$0xff]
        %v594 = vld [vmem:[%s222 + $0xa30] sm:$0xff]
        %v595 = vld [vmem:[%s222 + $0xa38] sm:$0xff]
        %v596 = vld [vmem:[%s222 + $0xa40] sm:$0xff]
        %v597 = vld [vmem:[%s222 + $0xa48] sm:$0xff]
        %v598 = vld [vmem:[%s222 + $0xa50] sm:$0xff]
        %v599 = vld [vmem:[%s222 + $0xa58] sm:$0xff]
        %v600 = vld [vmem:[%s222 + $0xa60] sm:$0xff]
        %v601 = vld [vmem:[%s222 + $0xa68] sm:$0xff]
        %v602 = vld [vmem:[%s222 + $0xa70] sm:$0xff]
        %v603 = vld [vmem:[%s222 + $0xa78] sm:$0xff]
        %v604 = vld [vmem:[%s222 + $0xa80] sm:$0xff]
        %v605 = vld [vmem:[%s222 + $0xa88] sm:$0xff]
        %v606 = vld [vmem:[%s222 + $0xa90] sm:$0xff]
        %v607 = vld [vmem:[%s222 + $0xa98] sm:$0xff]
        %v608 = vld [vmem:[%s222 + $0xaa0] sm:$0xff]
        %v609 = vld [vmem:[%s222 + $0xaa8] sm:$0xff]
        %v610 = vld [vmem:[%s222 + $0xab0] sm:$0xff]
        %v611 = vld [vmem:[%s222 + $0xab8] sm:$0xff]
        %v612 = vld [vmem:[%s222 + $0xac0] sm:$0xff]
        %v613 = vld [vmem:[%s222 + $0xac8] sm:$0xff]
        %v614 = vld [vmem:[%s222 + $0xad0] sm:$0xff]
        %v615 = vld [vmem:[%s222 + $0xad8] sm:$0xff]
        %v616 = vld [vmem:[%s222 + $0xae0] sm:$0xff]
        %v617 = vld [vmem:[%s222 + $0xae8] sm:$0xff]
        %v618 = vld [vmem:[%s222 + $0xaf0] sm:$0xff]
        %v619 = vld [vmem:[%s222 + $0xaf8] sm:$0xff]
        %v620 = vld [vmem:[%s222 + $0xb00] sm:$0xff]
        %v621 = vld [vmem:[%s222 + $0xb08] sm:$0xff]
        %v622 = vld [vmem:[%s222 + $0xb10] sm:$0xff]
        %v623 = vld [vmem:[%s222 + $0xb18] sm:$0xff]
        %v624 = vld [vmem:[%s222 + $0xb20] sm:$0xff]
        %v625 = vld [vmem:[%s222 + $0xb28] sm:$0xff]
        %v626 = vld [vmem:[%s222 + $0xb30] sm:$0xff]
        %v627 = vld [vmem:[%s222 + $0xb38] sm:$0xff]
        %v628 = vld [vmem:[%s222 + $0xb40] sm:$0xff]
        %v629 = vld [vmem:[%s222 + $0xb48] sm:$0xff]
        %v630 = vld [vmem:[%s222 + $0xb50] sm:$0xff]
        %v631 = vld [vmem:[%s222 + $0xb58] sm:$0xff]
        %v632 = vld [vmem:[%s222 + $0xb60] sm:$0xff]
        %v633 = vld [vmem:[%s222 + $0xb68] sm:$0xff]
        %v634 = vld [vmem:[%s222 + $0xb70] sm:$0xff]
        %v635 = vld [vmem:[%s222 + $0xb78] sm:$0xff]
        %v636 = vld [vmem:[%s222 + $0xb80] sm:$0xff]
        %v637 = vld [vmem:[%s222 + $0xb88] sm:$0xff]
        %v638 = vld [vmem:[%s222 + $0xb90] sm:$0xff]
        %v639 = vld [vmem:[%s222 + $0xb98] sm:$0xff]
        %v640 = vld [vmem:[%s222 + $0xba0] sm:$0xff]
        %v641 = vld [vmem:[%s222 + $0xba8] sm:$0xff]
        %v642 = vld [vmem:[%s222 + $0xbb0] sm:$0xff]
        %v643 = vld [vmem:[%s222 + $0xbb8] sm:$0xff]
        %v644 = vld [vmem:[%s222 + $0xbc0] sm:$0xff]
        %v645 = vld [vmem:[%s222 + $0xbc8] sm:$0xff]
        %v646 = vld [vmem:[%s222 + $0xbd0] sm:$0xff]
        %v647 = vld [vmem:[%s222 + $0xbd8] sm:$0xff]
        %v648 = vld [vmem:[%s222 + $0xbe0] sm:$0xff]
        %v649 = vld [vmem:[%s222 + $0xbe8] sm:$0xff]
        %v650 = vld [vmem:[%s222 + $0xbf0] sm:$0xff]
        %v651 = vld [vmem:[%s222 + $0xbf8] sm:$0xff]
        %v652 = vld [vmem:[%s231] sm:$0xf]
        %v654 = vlaneseq
        %v655 = vshrl.u32 %v654, 7
        %v656 = vsub.s32 0, %v655
        %v657 = vrot.slane %v652, %v656
        %v658 = vlaneseq
        %v659 = vshrl.u32 %v658, 7
        %v660 = vsub.s32 1, %v659
        %v661 = vrot.slane %v652, %v660
        %v662 = vlaneseq
        %v663 = vshrl.u32 %v662, 7
        %v664 = vsub.s32 2, %v663
        %v665 = vrot.slane %v652, %v664
        %v666 = vlaneseq
        %v667 = vshrl.u32 %v666, 7
        %v668 = vsub.s32 3, %v667
        %v669 = vrot.slane %v652, %v668
        %674 = vmatprep.subr.mxu0 %v329
        %675 = vmatpush1.msra.mxu0 %v328
        %676 = vmatprep.subr.mxu0 %v325
        %677 = vmatpush1.msra.mxu0 %v324
        %678 = vmatprep.subr.mxu0 %v321
        %679 = vmatpush1.msra.mxu0 %v320
        %680 = vmatprep.subr.mxu0 %v317
        %681 = vmatpush1.msra.mxu0 %v316
        %682 = vmatprep.subr.mxu0 %v313
        %683 = vmatpush1.msra.mxu0 %v312
        %684 = vmatprep.subr.mxu0 %v309
        %685 = vmatpush1.msra.mxu0 %v308
        %686 = vmatprep.subr.mxu0 %v305
        %687 = vmatpush1.msra.mxu0 %v304
        %688 = vmatprep.subr.mxu0 %v301
        %689 = vmatpush1.msra.mxu0 %v300
        %690 = vmatprep.subr.mxu0 %v297
        %691 = vmatpush1.msra.mxu0 %v296
        %692 = vmatprep.subr.mxu0 %v293
        %693 = vmatpush1.msra.mxu0 %v292
        %694 = vmatprep.subr.mxu0 %v289
        %695 = vmatpush1.msra.mxu0 %v288
        %696 = vmatprep.subr.mxu0 %v285
        %697 = vmatpush1.msra.mxu0 %v284
        %698 = vmatprep.subr.mxu0 %v281
        %699 = vmatpush1.msra.mxu0 %v280
        %700 = vmatprep.subr.mxu0 %v277
        %701 = vmatpush1.msra.mxu0 %v276
        %702 = vmatprep.subr.mxu0 %v273
        %703 = vmatpush1.msra.mxu0 %v272
        %704 = vmatprep.subr.mxu0 %v269
        %705 = vmatpush1.msra.mxu0 %v268
        %706 = vmatprep.subr.mxu0 %v393
        %707 = vmatpush2.msra.mxu0 %v392
        %708 = vmatprep.subr.mxu0 %v389
        %709 = vmatpush2.msra.mxu0 %v388
        %710 = vmatprep.subr.mxu0 %v385
        %711 = vmatpush2.msra.mxu0 %v384
        %712 = vmatprep.subr.mxu0 %v381
        %713 = vmatpush2.msra.mxu0 %v380
        %714 = vmatprep.subr.mxu0 %v377
        %715 = vmatpush2.msra.mxu0 %v376
        %716 = vmatprep.subr.mxu0 %v373
        %717 = vmatpush2.msra.mxu0 %v372
        %718 = vmatprep.subr.mxu0 %v369
        %719 = vmatpush2.msra.mxu0 %v368
        %720 = vmatprep.subr.mxu0 %v365
        %721 = vmatpush2.msra.mxu0 %v364
        %722 = vmatprep.subr.mxu0 %v361
        %723 = vmatpush2.msra.mxu0 %v360
        %724 = vmatprep.subr.mxu0 %v357
        %725 = vmatpush2.msra.mxu0 %v356
        %726 = vmatprep.subr.mxu0 %v353
        %727 = vmatpush2.msra.mxu0 %v352
        %728 = vmatprep.subr.mxu0 %v349
        %729 = vmatpush2.msra.mxu0 %v348
        %730 = vmatprep.subr.mxu0 %v345
        %731 = vmatpush2.msra.mxu0 %v344
        %732 = vmatprep.subr.mxu0 %v341
        %733 = vmatpush2.msra.mxu0 %v340
        %734 = vmatprep.subr.mxu0 %v337
        %735 = vmatpush2.msra.mxu0 %v336
        %736 = vmatprep.subr.mxu0 %v333
        %737 = vmatpush2.msra.mxu0 %v332
        %738 = vmatprep.mubr.f32.mxu0 %v263
        %739 = vmatmul.mubr.f32.gmra.mxu0 %v262
        %v740 = vpop.f32.mrf.mxu0
        %v741 = vadd.f32 %v657, %v740
        %v742 = vpop.f32.mrf.mxu0
        %v743 = vadd.f32 %v661, %v742
        %744 = vdwg.mxu0
        %745 = vmatprep.subr.mxu0 %v457
        %746 = vmatpush1.msra.mxu0 %v456
        %747 = vmatprep.subr.mxu0 %v453
        %748 = vmatpush1.msra.mxu0 %v452
        %749 = vmatprep.subr.mxu0 %v449
        %750 = vmatpush1.msra.mxu0 %v448
        %751 = vmatprep.subr.mxu0 %v445
        %752 = vmatpush1.msra.mxu0 %v444
        %753 = vmatprep.subr.mxu0 %v441
        %754 = vmatpush1.msra.mxu0 %v440
        %755 = vmatprep.subr.mxu0 %v437
        %756 = vmatpush1.msra.mxu0 %v436
        %757 = vmatprep.subr.mxu0 %v433
        %758 = vmatpush1.msra.mxu0 %v432
        %759 = vmatprep.subr.mxu0 %v429
        %760 = vmatpush1.msra.mxu0 %v428
        %761 = vmatprep.subr.mxu0 %v425
        %762 = vmatpush1.msra.mxu0 %v424
        %763 = vmatprep.subr.mxu0 %v421
        %764 = vmatpush1.msra.mxu0 %v420
        %765 = vmatprep.subr.mxu0 %v417
        %766 = vmatpush1.msra.mxu0 %v416
        %767 = vmatprep.subr.mxu0 %v413
        %768 = vmatpush1.msra.mxu0 %v412
        %769 = vmatprep.subr.mxu0 %v409
        %770 = vmatpush1.msra.mxu0 %v408
        %771 = vmatprep.subr.mxu0 %v405
        %772 = vmatpush1.msra.mxu0 %v404
        %773 = vmatprep.subr.mxu0 %v401
        %774 = vmatpush1.msra.mxu0 %v400
        %775 = vmatprep.subr.mxu0 %v397
        %776 = vmatpush1.msra.mxu0 %v396
        %777 = vmatprep.subr.mxu0 %v521
        %778 = vmatpush2.msra.mxu0 %v520
        %779 = vmatprep.subr.mxu0 %v517
        %780 = vmatpush2.msra.mxu0 %v516
        %781 = vmatprep.subr.mxu0 %v513
        %782 = vmatpush2.msra.mxu0 %v512
        %783 = vmatprep.subr.mxu0 %v509
        %784 = vmatpush2.msra.mxu0 %v508
        %785 = vmatprep.subr.mxu0 %v505
        %786 = vmatpush2.msra.mxu0 %v504
        %787 = vmatprep.subr.mxu0 %v501
        %788 = vmatpush2.msra.mxu0 %v500
        %789 = vmatprep.subr.mxu0 %v497
        %790 = vmatpush2.msra.mxu0 %v496
        %791 = vmatprep.subr.mxu0 %v493
        %792 = vmatpush2.msra.mxu0 %v492
        %793 = vmatprep.subr.mxu0 %v489
        %794 = vmatpush2.msra.mxu0 %v488
        %795 = vmatprep.subr.mxu0 %v485
        %796 = vmatpush2.msra.mxu0 %v484
        %797 = vmatprep.subr.mxu0 %v481
        %798 = vmatpush2.msra.mxu0 %v480
        %799 = vmatprep.subr.mxu0 %v477
        %800 = vmatpush2.msra.mxu0 %v476
        %801 = vmatprep.subr.mxu0 %v473
        %802 = vmatpush2.msra.mxu0 %v472
        %803 = vmatprep.subr.mxu0 %v469
        %804 = vmatpush2.msra.mxu0 %v468
        %805 = vmatprep.subr.mxu0 %v465
        %806 = vmatpush2.msra.mxu0 %v464
        %807 = vmatprep.subr.mxu0 %v461
        %808 = vmatpush2.msra.mxu0 %v460
        %809 = vmatprep.mubr.f32.mxu0 %v265
        %810 = vmatmul.mubr.f32.gmra.mxu0 %v264
        %v811 = vpop.f32.mrf.mxu0
        %v812 = vadd.f32 %v741, %v811
        %v813 = vpop.f32.mrf.mxu0
        %v814 = vadd.f32 %v743, %v813
        %815 = vdwg.mxu0
        %816 = vmatprep.subr.mxu0 %v585
        %817 = vmatpush1.msra.mxu0 %v584
        %818 = vmatprep.subr.mxu0 %v581
        %819 = vmatpush1.msra.mxu0 %v580
        %820 = vmatprep.subr.mxu0 %v577
        %821 = vmatpush1.msra.mxu0 %v576
        %822 = vmatprep.subr.mxu0 %v573
        %823 = vmatpush1.msra.mxu0 %v572
        %824 = vmatprep.subr.mxu0 %v569
        %825 = vmatpush1.msra.mxu0 %v568
        %826 = vmatprep.subr.mxu0 %v565
        %827 = vmatpush1.msra.mxu0 %v564
        %828 = vmatprep.subr.mxu0 %v561
        %829 = vmatpush1.msra.mxu0 %v560
        %830 = vmatprep.subr.mxu0 %v557
        %831 = vmatpush1.msra.mxu0 %v556
        %832 = vmatprep.subr.mxu0 %v553
        %833 = vmatpush1.msra.mxu0 %v552
        %834 = vmatprep.subr.mxu0 %v549
        %835 = vmatpush1.msra.mxu0 %v548
        %836 = vmatprep.subr.mxu0 %v545
        %837 = vmatpush1.msra.mxu0 %v544
        %838 = vmatprep.subr.mxu0 %v541
        %839 = vmatpush1.msra.mxu0 %v540
        %840 = vmatprep.subr.mxu0 %v537
        %841 = vmatpush1.msra.mxu0 %v536
        %842 = vmatprep.subr.mxu0 %v533
        %843 = vmatpush1.msra.mxu0 %v532
        %844 = vmatprep.subr.mxu0 %v529
        %845 = vmatpush1.msra.mxu0 %v528
        %846 = vmatprep.subr.mxu0 %v525
        %847 = vmatpush1.msra.mxu0 %v524
        %848 = vmatprep.subr.mxu0 %v649
        %849 = vmatpush2.msra.mxu0 %v648
        %850 = vmatprep.subr.mxu0 %v645
        %851 = vmatpush2.msra.mxu0 %v644
        %852 = vmatprep.subr.mxu0 %v641
        %853 = vmatpush2.msra.mxu0 %v640
        %854 = vmatprep.subr.mxu0 %v637
        %855 = vmatpush2.msra.mxu0 %v636
        %856 = vmatprep.subr.mxu0 %v633
        %857 = vmatpush2.msra.mxu0 %v632
        %858 = vmatprep.subr.mxu0 %v629
        %859 = vmatpush2.msra.mxu0 %v628
        %860 = vmatprep.subr.mxu0 %v625
        %861 = vmatpush2.msra.mxu0 %v624
        %862 = vmatprep.subr.mxu0 %v621
        %863 = vmatpush2.msra.mxu0 %v620
        %864 = vmatprep.subr.mxu0 %v617
        %865 = vmatpush2.msra.mxu0 %v616
        %866 = vmatprep.subr.mxu0 %v613
        %867 = vmatpush2.msra.mxu0 %v612
        %868 = vmatprep.subr.mxu0 %v609
        %869 = vmatpush2.msra.mxu0 %v608
        %870 = vmatprep.subr.mxu0 %v605
        %871 = vmatpush2.msra.mxu0 %v604
        %872 = vmatprep.subr.mxu0 %v601
        %873 = vmatpush2.msra.mxu0 %v600
        %874 = vmatprep.subr.mxu0 %v597
        %875 = vmatpush2.msra.mxu0 %v596
        %876 = vmatprep.subr.mxu0 %v593
        %877 = vmatpush2.msra.mxu0 %v592
        %878 = vmatprep.subr.mxu0 %v589
        %879 = vmatpush2.msra.mxu0 %v588
        %880 = vmatprep.mubr.f32.mxu0 %v267
        %881 = vmatmul.mubr.f32.gmra.mxu0 %v266
        %v882 = vpop.f32.mrf.mxu0
        %v883 = vadd.f32 %v812, %v882
        %v884 = vpop.f32.mrf.mxu0
        %v885 = vadd.f32 %v814, %v884
        %886 = vdwg.mxu0
        %887 = vmatprep.subr.mxu0 %v331
        %888 = vmatpush1.msra.mxu0 %v330
        %889 = vmatprep.subr.mxu0 %v327
        %890 = vmatpush1.msra.mxu0 %v326
        %891 = vmatprep.subr.mxu0 %v323
        %892 = vmatpush1.msra.mxu0 %v322
        %893 = vmatprep.subr.mxu0 %v319
        %894 = vmatpush1.msra.mxu0 %v318
        %895 = vmatprep.subr.mxu0 %v315
        %896 = vmatpush1.msra.mxu0 %v314
        %897 = vmatprep.subr.mxu0 %v311
        %898 = vmatpush1.msra.mxu0 %v310
        %899 = vmatprep.subr.mxu0 %v307
        %900 = vmatpush1.msra.mxu0 %v306
        %901 = vmatprep.subr.mxu0 %v303
        %902 = vmatpush1.msra.mxu0 %v302
        %903 = vmatprep.subr.mxu0 %v299
        %904 = vmatpush1.msra.mxu0 %v298
        %905 = vmatprep.subr.mxu0 %v295
        %906 = vmatpush1.msra.mxu0 %v294
        %907 = vmatprep.subr.mxu0 %v291
        %908 = vmatpush1.msra.mxu0 %v290
        %909 = vmatprep.subr.mxu0 %v287
        %910 = vmatpush1.msra.mxu0 %v286
        %911 = vmatprep.subr.mxu0 %v283
        %912 = vmatpush1.msra.mxu0 %v282
        %913 = vmatprep.subr.mxu0 %v279
        %914 = vmatpush1.msra.mxu0 %v278
        %915 = vmatprep.subr.mxu0 %v275
        %916 = vmatpush1.msra.mxu0 %v274
        %917 = vmatprep.subr.mxu0 %v271
        %918 = vmatpush1.msra.mxu0 %v270
        %919 = vmatprep.subr.mxu0 %v395
        %920 = vmatpush2.msra.mxu0 %v394
        %921 = vmatprep.subr.mxu0 %v391
        %922 = vmatpush2.msra.mxu0 %v390
        %923 = vmatprep.subr.mxu0 %v387
        %924 = vmatpush2.msra.mxu0 %v386
        %925 = vmatprep.subr.mxu0 %v383
        %926 = vmatpush2.msra.mxu0 %v382
        %927 = vmatprep.subr.mxu0 %v379
        %928 = vmatpush2.msra.mxu0 %v378
        %929 = vmatprep.subr.mxu0 %v375
        %930 = vmatpush2.msra.mxu0 %v374
        %931 = vmatprep.subr.mxu0 %v371
        %932 = vmatpush2.msra.mxu0 %v370
        %933 = vmatprep.subr.mxu0 %v367
        %934 = vmatpush2.msra.mxu0 %v366
        %935 = vmatprep.subr.mxu0 %v363
        %936 = vmatpush2.msra.mxu0 %v362
        %937 = vmatprep.subr.mxu0 %v359
        %938 = vmatpush2.msra.mxu0 %v358
        %939 = vmatprep.subr.mxu0 %v355
        %940 = vmatpush2.msra.mxu0 %v354
        %941 = vmatprep.subr.mxu0 %v351
        %942 = vmatpush2.msra.mxu0 %v350
        %943 = vmatprep.subr.mxu0 %v347
        %944 = vmatpush2.msra.mxu0 %v346
        %945 = vmatprep.subr.mxu0 %v343
        %946 = vmatpush2.msra.mxu0 %v342
        %947 = vmatprep.subr.mxu0 %v339
        %948 = vmatpush2.msra.mxu0 %v338
        %949 = vmatprep.subr.mxu0 %v335
        %950 = vmatpush2.msra.mxu0 %v334
        %951 = vmatprep.mubr.f32.mxu0 %v263
        %952 = vmatmul.mubr.f32.gmra.mxu0 %v262
        %v953 = vpop.f32.mrf.mxu0
        %v954 = vadd.f32 %v665, %v953
        %v955 = vpop.f32.mrf.mxu0
        %v956 = vadd.f32 %v669, %v955
        %957 = vdwg.mxu0
        %958 = vmatprep.subr.mxu0 %v459
        %959 = vmatpush1.msra.mxu0 %v458
        %960 = vmatprep.subr.mxu0 %v455
        %961 = vmatpush1.msra.mxu0 %v454
        %962 = vmatprep.subr.mxu0 %v451
        %963 = vmatpush1.msra.mxu0 %v450
        %964 = vmatprep.subr.mxu0 %v447
        %965 = vmatpush1.msra.mxu0 %v446
        %966 = vmatprep.subr.mxu0 %v443
        %967 = vmatpush1.msra.mxu0 %v442
        %968 = vmatprep.subr.mxu0 %v439
        %969 = vmatpush1.msra.mxu0 %v438
        %970 = vmatprep.subr.mxu0 %v435
        %971 = vmatpush1.msra.mxu0 %v434
        %972 = vmatprep.subr.mxu0 %v431
        %973 = vmatpush1.msra.mxu0 %v430
        %974 = vmatprep.subr.mxu0 %v427
        %975 = vmatpush1.msra.mxu0 %v426
        %976 = vmatprep.subr.mxu0 %v423
        %977 = vmatpush1.msra.mxu0 %v422
        %978 = vmatprep.subr.mxu0 %v419
        %979 = vmatpush1.msra.mxu0 %v418
        %980 = vmatprep.subr.mxu0 %v415
        %981 = vmatpush1.msra.mxu0 %v414
        %982 = vmatprep.subr.mxu0 %v411
        %983 = vmatpush1.msra.mxu0 %v410
        %984 = vmatprep.subr.mxu0 %v407
        %985 = vmatpush1.msra.mxu0 %v406
        %986 = vmatprep.subr.mxu0 %v403
        %987 = vmatpush1.msra.mxu0 %v402
        %988 = vmatprep.subr.mxu0 %v399
        %989 = vmatpush1.msra.mxu0 %v398
        %990 = vmatprep.subr.mxu0 %v523
        %991 = vmatpush2.msra.mxu0 %v522
        %992 = vmatprep.subr.mxu0 %v519
        %993 = vmatpush2.msra.mxu0 %v518
        %994 = vmatprep.subr.mxu0 %v515
        %995 = vmatpush2.msra.mxu0 %v514
        %996 = vmatprep.subr.mxu0 %v511
        %997 = vmatpush2.msra.mxu0 %v510
        %998 = vmatprep.subr.mxu0 %v507
        %999 = vmatpush2.msra.mxu0 %v506
        %1000 = vmatprep.subr.mxu0 %v503
        %1001 = vmatpush2.msra.mxu0 %v502
        %1002 = vmatprep.subr.mxu0 %v499
        %1003 = vmatpush2.msra.mxu0 %v498
        %1004 = vmatprep.subr.mxu0 %v495
        %1005 = vmatpush2.msra.mxu0 %v494
        %1006 = vmatprep.subr.mxu0 %v491
        %1007 = vmatpush2.msra.mxu0 %v490
        %1008 = vmatprep.subr.mxu0 %v487
        %1009 = vmatpush2.msra.mxu0 %v486
        %1010 = vmatprep.subr.mxu0 %v483
        %1011 = vmatpush2.msra.mxu0 %v482
        %1012 = vmatprep.subr.mxu0 %v479
        %1013 = vmatpush2.msra.mxu0 %v478
        %1014 = vmatprep.subr.mxu0 %v475
        %1015 = vmatpush2.msra.mxu0 %v474
        %1016 = vmatprep.subr.mxu0 %v471
        %1017 = vmatpush2.msra.mxu0 %v470
        %1018 = vmatprep.subr.mxu0 %v467
        %1019 = vmatpush2.msra.mxu0 %v466
        %1020 = vmatprep.subr.mxu0 %v463
        %1021 = vmatpush2.msra.mxu0 %v462
        %1022 = vmatprep.mubr.f32.mxu0 %v265
        %1023 = vmatmul.mubr.f32.gmra.mxu0 %v264
        %v1024 = vpop.f32.mrf.mxu0
        %v1025 = vadd.f32 %v954, %v1024
        %v1026 = vpop.f32.mrf.mxu0
        %v1027 = vadd.f32 %v956, %v1026
        %1028 = vdwg.mxu0
        %1029 = vmatprep.subr.mxu0 %v587
        %1030 = vmatpush1.msra.mxu0 %v586
        %1031 = vmatprep.subr.mxu0 %v583
        %1032 = vmatpush1.msra.mxu0 %v582
        %1033 = vmatprep.subr.mxu0 %v579
        %1034 = vmatpush1.msra.mxu0 %v578
        %1035 = vmatprep.subr.mxu0 %v575
        %1036 = vmatpush1.msra.mxu0 %v574
        %1037 = vmatprep.subr.mxu0 %v571
        %1038 = vmatpush1.msra.mxu0 %v570
        %1039 = vmatprep.subr.mxu0 %v567
        %1040 = vmatpush1.msra.mxu0 %v566
        %1041 = vmatprep.subr.mxu0 %v563
        %1042 = vmatpush1.msra.mxu0 %v562
        %1043 = vmatprep.subr.mxu0 %v559
        %1044 = vmatpush1.msra.mxu0 %v558
        %1045 = vmatprep.subr.mxu0 %v555
        %1046 = vmatpush1.msra.mxu0 %v554
        %1047 = vmatprep.subr.mxu0 %v551
        %1048 = vmatpush1.msra.mxu0 %v550
        %1049 = vmatprep.subr.mxu0 %v547
        %1050 = vmatpush1.msra.mxu0 %v546
        %1051 = vmatprep.subr.mxu0 %v543
        %1052 = vmatpush1.msra.mxu0 %v542
        %1053 = vmatprep.subr.mxu0 %v539
        %1054 = vmatpush1.msra.mxu0 %v538
        %1055 = vmatprep.subr.mxu0 %v535
        %1056 = vmatpush1.msra.mxu0 %v534
        %1057 = vmatprep.subr.mxu0 %v531
        %1058 = vmatpush1.msra.mxu0 %v530
        %1059 = vmatprep.subr.mxu0 %v527
        %1060 = vmatpush1.msra.mxu0 %v526
        %1061 = vmatprep.subr.mxu0 %v651
        %1062 = vmatpush2.msra.mxu0 %v650
        %1063 = vmatprep.subr.mxu0 %v647
        %1064 = vmatpush2.msra.mxu0 %v646
        %1065 = vmatprep.subr.mxu0 %v643
        %1066 = vmatpush2.msra.mxu0 %v642
        %1067 = vmatprep.subr.mxu0 %v639
        %1068 = vmatpush2.msra.mxu0 %v638
        %1069 = vmatprep.subr.mxu0 %v635
        %1070 = vmatpush2.msra.mxu0 %v634
        %1071 = vmatprep.subr.mxu0 %v631
        %1072 = vmatpush2.msra.mxu0 %v630
        %1073 = vmatprep.subr.mxu0 %v627
        %1074 = vmatpush2.msra.mxu0 %v626
        %1075 = vmatprep.subr.mxu0 %v623
        %1076 = vmatpush2.msra.mxu0 %v622
        %1077 = vmatprep.subr.mxu0 %v619
        %1078 = vmatpush2.msra.mxu0 %v618
        %1079 = vmatprep.subr.mxu0 %v615
        %1080 = vmatpush2.msra.mxu0 %v614
        %1081 = vmatprep.subr.mxu0 %v611
        %1082 = vmatpush2.msra.mxu0 %v610
        %1083 = vmatprep.subr.mxu0 %v607
        %1084 = vmatpush2.msra.mxu0 %v606
        %1085 = vmatprep.subr.mxu0 %v603
        %1086 = vmatpush2.msra.mxu0 %v602
        %1087 = vmatprep.subr.mxu0 %v599
        %1088 = vmatpush2.msra.mxu0 %v598
        %1089 = vmatprep.subr.mxu0 %v595
        %1090 = vmatpush2.msra.mxu0 %v594
        %1091 = vmatprep.subr.mxu0 %v591
        %1092 = vmatpush2.msra.mxu0 %v590
        %1093 = vmatprep.mubr.f32.mxu0 %v267
        %1094 = vmatmul.mubr.f32.gmra.mxu0 %v266
        %v1095 = vpop.f32.mrf.mxu0
        %v1096 = vadd.f32 %v1025, %v1095
        %v1097 = vpop.f32.mrf.mxu0
        %v1098 = vadd.f32 %v1027, %v1097
        %1099 = vdwg.mxu0
        %1100 = vst [vmem:[%s258] sm:$0xff] %v883
        %1101 = vst [vmem:[%s258 + $0x8] sm:$0xff] %v885
        %1102 = vst [vmem:[%s258 + $0x10] sm:$0xff] %v1096
        %1103 = vst [vmem:[%s258 + $0x18] sm:$0xff] %v1098
        %s1104 = sand.u32 %s121, 1
        %s1105 = scalar_lea.sflag [#allocation4], %s1104
        %s1106 = sand.u32 %s121, 1
        %s1107 = smul.addr %s1106, 32
        %s1108 = scalar_lea.vmem [#allocation8], %s1107
        // Predicated region
        $region45: #{_gating_linear.1} parent=31 // pred_check
          %p1109 = pneg %p131
        $region46: #{_gating_linear.1} parent=31 // pred_check_branch
          %1111 = sbr.rel (%p1109) target = $region48
        $region47: #{_gating_linear.1} parent=31 // pred_region
          %s1112 = smul.u32 4, %s25
          %s1114 = ssub.s32 512, 512
          %1115 = vsyncadd %s1105, %s1114
          %s1116 = smul.addr %s26, 8
          %s1117 = sadd.s32 %s1112, %s1116
          %s1118 = smul.addr %s1117, 128
          %s1119 = scalar_lea.hbm %s3, %s1118
          %s1121 = sshll.u32 %s1108, 4
          %s1122 = int_to_ptr.vmem [resolvable:$true] %s1121
          %1124 = dma.vmem_to_hbm [thread:$0]  %s1122, 512, %s1119, %s1105
        $region48: #{_gating_linear.1} parent=31 // pred_fallthru
          _
      $region32: #{_gating_linear.1} parent=5 // pred_fallthru
        _
      %p1125 = scmp.le.s32.totalorder 2, %s16
      // Predicated region
      $region49: #{_gating_linear.1} parent=5 // pred_check
        %p1126 = pneg %p1125
      $region50: #{_gating_linear.1} parent=5 // pred_check_branch
        %1128 = sbr.rel (%p1126) target = $region52
      $region51: #{_gating_linear.1} parent=5 // pred_region
        %s1129 = ssub.s32 %s16, 2
        // Predicated region
        $region53: #{_gating_linear.1} parent=51 // pred_check
          %p1130 = pneg %p137
        $region54: #{_gating_linear.1} parent=51 // pred_check_branch
          %1132 = sbr.rel (%p1130) target = $region56
        $region55: #{_gating_linear.1} parent=51 // pred_region
          %s1133 = sand.u32 %s122, 1
          %s1134 = scalar_lea.sflag [#allocation4], %s1133
          %s1135 = sand.u32 %s122, 1
          %s1136 = smul.addr %s1135, 32
          %s1137 = scalar_lea.vmem [#allocation8], %s1136
          %1138 = dma.done %s1134, 512
        $region56: #{_gating_linear.1} parent=51 // pred_fallthru
          _
      $region52: #{_gating_linear.1} parent=5 // pred_fallthru
        _
    $region6: #{_gating_linear.1} parent=1 // loop_footer
      %s20 = sadd.s32 1, %s16
    $region7: #{_gating_linear.1} parent=1 // loop_footer_branch
      %15 = sbr.rel target = $region3
    $region8: #{_gating_linear.1} parent=1 // loop_exit
      _
    %1139 = vsyncpa [#allocation3], 1
    %s1140 = scalar_lea.sflag [#allocation3], 1
    %1141 = vsyncpa %s1140, 1
    %1142 = vsyncpa [#allocation6], 1
    %s1143 = scalar_lea.sflag [#allocation6], 1
    %1144 = vsyncpa %s1143, 1
    %1145 = vsyncpa [#allocation4], 1
    %s1146 = scalar_lea.sflag [#allocation4], 1
    %1147 = vsyncpa %s1146, 1

</llo_original>
